<compile_context>
chip_gen: v7x
topology: tpu7x:2x2x1
jax: 0.10.0
libtpu: 0.0.40
codegen_flags: <defaults>
</compile_context>

<pallas_src>
import jax
import jax.numpy as jnp
from jax.experimental import pallas as pl
from jax.experimental.pallas import tpu as pltpu


def _transpose_tile_kernel(x_ref, o_ref):
    # x_ref: (BP, TH, TW) VMEM tile, o_ref: (BP, TW, TH) VMEM tile.
    o_ref[...] = jnp.swapaxes(x_ref[...], 1, 2)


def _pick_tile(dim, target=512):
    """Tile size along one transposed axis.

    The returned size is either the full dimension (always a legal block) or a
    multiple of 128 that divides `dim`, so both the input block (.., TH, TW)
    and the transposed output block (.., TW, TH) stay (8,128)-aligned and
    stores are never masked.
    """
    if dim <= target:
        return dim
    if dim % 128 != 0:
        # Cannot tile this axis without unaligned/partial blocks; keep full.
        return dim
    t = (target // 128) * 128
    for cand in range(t, 0, -128):
        if dim % cand == 0:
            return cand
    return dim  # unreachable: 128 always divides dim in this branch


def transpose_pallas(x, dims=(2, 3)):
    """Pallas equivalent of torch.Tensor.transpose(*dims).

    Implements the case where the two swapped axes are the LAST two dims (the
    hot path that needs real data shuffling on TPU).  All leading axes are
    flattened into a single grid axis.
    """
    nd = x.ndim
    d0, d1 = sorted(d % nd for d in dims)
    assert (d0, d1) == (nd - 2, nd - 1), (
        "this Pallas kernel implements the last-two-axis transpose")
    # TODO(synk): transposes of non-trailing dim pairs are not handled here;
    # they would need a different (strided) block layout.

    lead = x.shape[:-2]
    H, W = x.shape[-2], x.shape[-1]
    P = 1
    for d in lead:
        P *= d
    x3 = x.reshape(P, H, W)                     # free reshape (contiguous)

    itemsize = jnp.dtype(x.dtype).itemsize
    th = _pick_tile(H)
    tw = _pick_tile(W)
    gh = H // th
    gw = W // tw

    # Batch whole planes per step when one tile already covers the plane
    # (amortizes the ~0.35 us per-grid-step overhead for tiny planes).
    if gh == 1 and gw == 1:
        plane_bytes = max(1, H * W * itemsize)
        bp = max(1, min(P, (1 << 20) // plane_bytes))    # ~1 MiB input block
        if P >= 2:
            bp = min(bp, max(1, P // 2))                 # keep >=2 steps (megacore)
        while P % bp != 0:                               # exact leading blocks
            bp -= 1
    else:
        bp = 1

    grid = (P // bp, gh, gw)

    out3 = pl.pallas_call(
        _transpose_tile_kernel,
        out_shape=jax.ShapeDtypeStruct((P, W, H), x.dtype),
        grid=grid,
        in_specs=[
            pl.BlockSpec((bp, th, tw), lambda p, i, j: (p, i, j)),
        ],
        # Tile swap lives in the output index_map: output block (j, i)
        # receives the transposed input tile (i, j).
        out_specs=pl.BlockSpec((bp, tw, th), lambda p, i, j: (p, j, i)),
        compiler_params=pltpu.CompilerParams(
            dimension_semantics=("parallel", "parallel", "parallel")),
        cost_estimate=pl.CostEstimate(
            flops=0,
            transcendentals=0,
            bytes_accessed=2 * x.size * itemsize),
    )(x3)

    return out3.reshape(*lead, W, H)


if __name__ == "__main__":
    key = jax.random.PRNGKey(0)

    # Small NCHW input matching the module's use; H != W so the transpose is
    # non-trivial.  Exercises the plane-batched (small-plane) path.
    x = jax.random.normal(key, (2, 4, 16, 32), dtype=jnp.float32)
    out = jax.block_until_ready(transpose_pallas(x, dims=(2, 3)))
    ref = jnp.swapaxes(x, 2, 3)  # PyTorch x.transpose(2, 3) semantics
    assert out.shape == ref.shape and out.dtype == ref.dtype
    assert jnp.array_equal(out, ref), "Pallas transpose mismatch (small path)"

    # Moderate lane-aligned input; exercises the tiled path (H split into
    # 128-row tiles, tile indices swapped in the output index_map).
    x2 = jax.random.normal(jax.random.PRNGKey(1), (1, 1, 640, 256),
                           dtype=jnp.float32)
    out2 = jax.block_until_ready(transpose_pallas(x2, dims=(2, 3)))
    ref2 = jnp.swapaxes(x2, 2, 3)
    assert out2.shape == ref2.shape
    assert jnp.array_equal(out2, ref2), "Pallas transpose mismatch (tiled path)"

    print("KERNEL_OK")
</pallas_src>

<mosaic_0001>
module attributes {stable_mosaic.version = 11 : i64} {
  func.func @_transpose_tile_kernel(%arg0: i32, %arg1: i32, %arg2: i32, %arg3: memref<4x16x32xf32, #tpu.memory_space<vmem>>, %arg4: memref<4x32x16xf32, #tpu.memory_space<vmem>>) attributes {dimension_semantics = [#tpu.dimension_semantics<parallel>, #tpu.dimension_semantics<parallel>, #tpu.dimension_semantics<parallel>], iteration_bounds = array<i64: 2, 1, 1>, scalar_prefetch = 0 : i64, scratch_operands = 0 : i64, tpu.core_type = #tpu.core_type<tc>, window_params = [{transform_indices = @transform_0, window_bounds = array<i64: 4, 16, 32>}, {transform_indices = @transform_1, window_bounds = array<i64: 4, 32, 16>}]} {
    %c0 = arith.constant 0 : index
    %c0_0 = arith.constant 0 : index
    %c0_1 = arith.constant 0 : index
    %0 = vector.load %arg3[%c0, %c0_0, %c0_1] : memref<4x16x32xf32, #tpu.memory_space<vmem>>, vector<4x16x32xf32>
    %1 = tpu.transpose %0, [0, 2, 1] : vector<4x16x32xf32> -> vector<4x32x16xf32>
    %c0_2 = arith.constant 0 : index
    %c0_3 = arith.constant 0 : index
    %c0_4 = arith.constant 0 : index
    %2 = vector.load %arg4[%c0_2, %c0_3, %c0_4] : memref<4x32x16xf32, #tpu.memory_space<vmem>>, vector<4x32x16xf32>
    tpu.vector_store %arg4[%c0_2, %c0_3, %c0_4], %1 {strides = array<i32>} : memref<4x32x16xf32, #tpu.memory_space<vmem>>, vector<4x32x16xf32>,
    return
  }
  func.func @transform_0(%arg0: i32, %arg1: i32, %arg2: i32) -> (i32, i32, i32) {
    %c0_i32 = arith.constant 0 : i32
    return %arg0, %arg1, %arg2 : i32, i32, i32
  }
  func.func @transform_1(%arg0: i32, %arg1: i32, %arg2: i32) -> (i32, i32, i32) {
    %c0_i32 = arith.constant 0 : i32
    return %arg0, %arg2, %arg1 : i32, i32, i32
  }
}

</mosaic_0001>

<llo_original>
// kernel: tpu_custom_call.1
$region0: #{tpu_custom_call.1}
  #allocation0 [shape = 'u32[]', space=smem, size = 0x4, offset = 0x4, fixed_abs, tag = 'smem constant byte address 0x4 - core index']
  #allocation1 [shape = 'u32[144,128]{1,0:T(1,128)}', space=vmem, size = 0x12000, scoped, tag = 'internal scratch']
  %s0 = inlined_call_operand.hbm [shape: f32[8,16,32], index: 0, kind: input, shape index: {}]
  %s1 = inlined_call_operand.vmem [shape: f32[8,32,16], index: 1, kind: output, shape index: {}]
  %s2 = sld [smem:[#allocation0]]
  $region41: #{tpu_custom_call.1} parent=0
    _
  %s4 = ssub.s32 1, %s2
  %s5 = scalar_select 0, %s4, %s2
  $region1: #{tpu_custom_call.1} parent=0
    #allocation2 [shape = 'u8[65536]{0}', space=vmem, size = 0x10000, scoped, tag = 'input window, operand 0']
    #allocation3 [shape = 's32[2]{0}', space=sflag, size = 0x8, scoped, tag = 'scoped memory for tpu_custom_call.1']
    %6 = vsyncpa [#allocation3], 0
    %s7 = scalar_lea.sflag [#allocation3], 1
    %8 = vsyncpa %s7, 0
    loop: start=0, step=1, limit=4
    $region2: #{tpu_custom_call.1} parent=1 // loop_pre_header
      _
    $region3: #{tpu_custom_call.1} parent=1 // loop_header
      %s10 = sphi 0, %s14
      %p11 = scmp.ge.s32.totalorder %s10, 4
      %s17 = sphi 0, %s36
      %s18 = sphi 0, %s32
      %s19 = sphi 0, %s28
      %s20 = sphi 0, %s17
      %s21 = sphi 0, %s18
      %s22 = sphi 0, %s19
      %s23 = sphi 0, %s20
      %s24 = sphi 0, %s21
      %s25 = sphi 0, %s22
      %s43 = sphi 0, %s45
      %s46 = sphi 0, %s43
      %s47 = sphi 0, %s46
      %s63 = sphi 0, %s47
      %s73 = sphi 0, %s75
      %s76 = sphi 0, %s73
      %s77 = sphi 0, %s76
      %s93 = sphi 0, %s77
    $region4: #{tpu_custom_call.1} parent=1 // loop_header_branch
      %13 = sbr.rel (%p11) target = $region8
    $region5: #{tpu_custom_call.1} parent=1 // loop_body
      %s15 = ssub.s32 %s10, 1
      %s16 = ssub.s32 %s10, 2
      %s26 = sadd.s32 1, %s19
      %p27 = scmp.ge.s32.totalorder %s26, 1
      %s28 = scalar_select %p27, 0, %s26
      %s29 = sadd.s32 1, %s18
      %s30 = scalar_select %p27, %s29, %s18
      %p31 = scmp.ge.s32.totalorder %s30, 1
      %s32 = scalar_select %p31, 0, %s30
      %s33 = sadd.s32 1, %s17
      %s34 = scalar_select %p31, %s33, %s17
      %p35 = scmp.ge.s32.totalorder %s34, 2
      %s36 = scalar_select %p35, 0, %s34
      %s37 = ssub.s32 %s17, %s36
      %s38 = ssub.s32 %s18, %s32
      %s39 = sor.u32 %s37, %s38
      %s40 = ssub.s32 %s19, %s28
      %s41 = sor.u32 %s39, %s40
      %p42 = scmp.eq.s32.totalorder %s41, 0
      %s44 = sadd.s32 %s43, 1
      %s45 = scalar_select %p42, %s43, %s44
      %p48 = pneg %p42
      %p49 = scmp.eq.s32.totalorder %s10, 1
      %p50 = por %p48, %p49
      %p51 = scmp.ne.s32.totalorder %s43, %s46
      %p52 = scmp.eq.s32.totalorder %s10, 0
      %p53 = por %p51, %p52
      %p54 = scmp.ne.s32.totalorder %s43, %s46
      %p55 = scmp.eq.s32.totalorder %s15, 1
      %p56 = por %p54, %p55
      %p57 = scmp.ne.s32.totalorder %s46, %s47
      %p58 = scmp.eq.s32.totalorder %s15, 0
      %p59 = por %p57, %p58
      %p60 = scmp.ne.s32.totalorder %s46, %s47
      %p61 = scmp.eq.s32.totalorder %s16, 1
      %p62 = por %p60, %p61
      %p64 = scmp.ne.s32.totalorder %s47, %s63
      %p65 = scmp.eq.s32.totalorder %s16, 0
      %p66 = por %p64, %p65
      %s67 = ssub.s32 %s17, %s36
      %s68 = ssub.s32 %s19, %s28
      %s69 = sor.u32 %s67, %s68
      %s70 = ssub.s32 %s18, %s32
      %s71 = sor.u32 %s69, %s70
      %p72 = scmp.eq.s32.totalorder %s71, 0
      %s74 = sadd.s32 %s73, 1
      %s75 = scalar_select %p72, %s73, %s74
      %p78 = pneg %p72
      %p79 = scmp.eq.s32.totalorder %s10, 1
      %p80 = por %p78, %p79
      %p81 = scmp.ne.s32.totalorder %s73, %s76
      %p82 = scmp.eq.s32.totalorder %s10, 0
      %p83 = por %p81, %p82
      %p84 = scmp.ne.s32.totalorder %s73, %s76
      %p85 = scmp.eq.s32.totalorder %s15, 1
      %p86 = por %p84, %p85
      %p87 = scmp.ne.s32.totalorder %s76, %s77
      %p88 = scmp.eq.s32.totalorder %s15, 0
      %p89 = por %p87, %p88
      %p90 = scmp.ne.s32.totalorder %s76, %s77
      %p91 = scmp.eq.s32.totalorder %s16, 1
      %p92 = por %p90, %p91
      %p94 = scmp.ne.s32.totalorder %s77, %s93
      %p95 = scmp.eq.s32.totalorder %s16, 0
      %p96 = por %p94, %p95
      %p97 = scmp.le.s32.totalorder 1, %s10
      %p98 = scmp.lt.s32.totalorder %s10, 3
      %p99 = pnand %p97, %p98
      %p100 = pneg %p99
      // Predicated region
      $region9: #{tpu_custom_call.1} parent=5 // pred_check
        _
      $region10: #{tpu_custom_call.1} parent=5 // pred_check_branch
        %102 = sbr.rel (%p99) target = $region12
      $region11: #{tpu_custom_call.1} parent=5 // pred_region
        %s103 = ssub.s32 %s10, 1
      $region12: #{tpu_custom_call.1} parent=5 // pred_fallthru
        _
      %p104 = scmp.lt.s32.totalorder %s10, 2
      // Predicated region
      $region13: #{tpu_custom_call.1} parent=5 // pred_check
        %p105 = pneg %p104
      $region14: #{tpu_custom_call.1} parent=5 // pred_check_branch
        %107 = sbr.rel (%p105) target = $region16
      $region15: #{tpu_custom_call.1} parent=5 // pred_region
        // Predicated region
        $region17: #{tpu_custom_call.1} parent=15 // pred_check
          %p108 = pneg %p53
        $region18: #{tpu_custom_call.1} parent=15 // pred_check_branch
          %110 = sbr.rel (%p108) target = $region20
        $region19: #{tpu_custom_call.1} parent=15 // pred_region
          %s111 = sand.u32 %s43, 1
          %s112 = scalar_lea.sflag [#allocation3], %s111
          %s113 = sand.u32 %s43, 1
          %s114 = smul.addr %s113, 64
          %s115 = scalar_lea.vmem [#allocation2], %s114
          %s116 = smul.u32 4, %s17
          %s117 = smul.u32 2, %s18
          %s119 = ssub.s32 1024, 1024
          %120 = vsyncadd %s112, %s119
          %s121 = sadd.s32 %s19, %s117
          %s122 = smul.addr %s116, 2
          %s123 = sadd.s32 %s121, %s122
          %s124 = smul.addr %s123, 128
          %s125 = scalar_lea.hbm %s0, %s124
          %s126 = sshll.u32 %s115, 4
          %s127 = int_to_ptr.vmem [resolvable:$true] %s126
          %132 = dma.hbm_to_vmem [thread:$0]  %s125, 1024, %s127, %s112, 128, 128, 8
        $region20: #{tpu_custom_call.1} parent=15 // pred_fallthru
          _
      $region16: #{tpu_custom_call.1} parent=5 // pred_fallthru
        _
      %p133 = scmp.le.s32.totalorder 1, %s10
      %p134 = scmp.lt.s32.totalorder %s10, 3
      %p135 = pnand %p133, %p134
      %p136 = pneg %p135
      // Predicated region
      $region21: #{tpu_custom_call.1} parent=5 // pred_check
        _
      $region22: #{tpu_custom_call.1} parent=5 // pred_check_branch
        %138 = sbr.rel (%p135) target = $region24
      $region23: #{tpu_custom_call.1} parent=5 // pred_region
        %s139 = ssub.s32 %s10, 1
        %s140 = sand.u32 %s46, 1
        %s141 = scalar_lea.sflag [#allocation3], %s140
        %s142 = sand.u32 %s46, 1
        %s143 = smul.addr %s142, 64
        %s144 = scalar_lea.vmem [#allocation2], %s143
        // Predicated region
        $region25: #{tpu_custom_call.1} parent=23 // pred_check
          %p145 = pneg %p59
        $region26: #{tpu_custom_call.1} parent=23 // pred_check_branch
          %147 = sbr.rel (%p145) target = $region28
        $region27: #{tpu_custom_call.1} parent=23 // pred_region
          %148 = dma.done %s141, 1024
        $region28: #{tpu_custom_call.1} parent=23 // pred_fallthru
          _
        %s149 = sand.u32 %s46, 1
        %s150 = scalar_lea.sflag [#allocation3], %s149
        %s151 = sand.u32 %s46, 1
        %s152 = smul.addr %s151, 64
        %s153 = scalar_lea.vmem [#allocation2], %s152
        %p154 = pneg %p59
        %p155 = pneg %p56
        %p156 = pneg %p89
        %p157 = pneg %p86
        %s158 = smul.u32 4, %s20
        %s159 = smul.u32 4, %s22
        %p160 = scmp.lt.s32.totalorder %s158, 7
        %s161 = scalar_select %p160, %s158, 7
        %p162 = scmp.lt.s32.totalorder %s159, 3
        %s163 = scalar_select %p162, %s159, 3
        %p164 = scmp.lt.s32.totalorder %s21, 0
        %s165 = scalar_select %p164, %s21, 0
        %s166 = sadd.s32 %s165, %s163
        %s167 = smul.addr %s161, 4
        %s168 = sadd.s32 %s166, %s167
        %s169 = smul.addr %s168, 8
        %s170 = scalar_lea.vmem %s1, %s169
        %s171 = smul.u32 4, %s20
        %s172 = smul.u32 2, %s21
        %s173 = smul.u32 4, %s20
        %s174 = smul.u32 4, %s22
        %p175 = scmp.lt.s32.totalorder %s173, 7
        %s176 = scalar_select %p175, %s173, 7
        %p177 = scmp.lt.s32.totalorder %s174, 3
        %s178 = scalar_select %p177, %s174, 3
        %p179 = scmp.lt.s32.totalorder %s21, 0
        %s180 = scalar_select %p179, %s21, 0
        %s181 = sadd.s32 %s180, %s178
        %s182 = smul.addr %s176, 4
        %s183 = sadd.s32 %s181, %s182
        %s184 = smul.addr %s183, 8
        %s185 = scalar_lea.vmem %s1, %s184
        %s186 = smul.u32 4, %s20
        %s187 = smul.u32 4, %s22
        %v188 = vld [vmem:[%s144] sm:$0xff]
        %v189 = vld [vmem:[%s144 + $0x8] sm:$0xff]
        %v190 = vld [vmem:[%s144 + $0x10] sm:$0xff]
        %v191 = vld [vmem:[%s144 + $0x18] sm:$0xff]
        %v192 = vld [vmem:[%s144 + $0x20] sm:$0xff]
        %v193 = vld [vmem:[%s144 + $0x28] sm:$0xff]
        %v194 = vld [vmem:[%s144 + $0x30] sm:$0xff]
        %v195 = vld [vmem:[%s144 + $0x38] sm:$0xff]
        %196 = vxpose.xlu0.b32.start [1/16] %v188, 128
        %197 = vxpose.xlu0.b32.cont [2/16] %v189, 128
        %198 = vxpose.xlu0.b32.cont [3/16] 0.0, 128
        %199 = vxpose.xlu0.b32.cont [4/16] 0.0, 128
        %200 = vxpose.xlu0.b32.cont [5/16] 0.0, 128
        %201 = vxpose.xlu0.b32.cont [6/16] 0.0, 128
        %202 = vxpose.xlu0.b32.cont [7/16] 0.0, 128
        %203 = vxpose.xlu0.b32.cont [8/16] 0.0, 128
        %204 = vxpose.xlu0.b32.cont [9/16] 0.0, 128
        %205 = vxpose.xlu0.b32.cont [10/16] 0.0, 128
        %206 = vxpose.xlu0.b32.cont [11/16] 0.0, 128
        %207 = vxpose.xlu0.b32.cont [12/16] 0.0, 128
        %208 = vxpose.xlu0.b32.cont [13/16] 0.0, 128
        %209 = vxpose.xlu0.b32.cont [14/16] 0.0, 128
        %210 = vxpose.xlu0.b32.cont [15/16] 0.0, 128
        %211 = vxpose.xlu0.b32.end [16/16] 0.0, 128
        %v212 = vpop.trf.xlu0
        %v213 = vpop.trf.xlu0
        %v214 = vpop.trf.xlu0
        %v215 = vpop.trf.xlu0
        %v216 = vpop.trf.xlu0
        %v217 = vpop.trf.xlu0
        %v218 = vpop.trf.xlu0
        %v219 = vpop.trf.xlu0
        %v220 = vpop.trf.xlu0
        %v221 = vpop.trf.xlu0
        %v222 = vpop.trf.xlu0
        %v223 = vpop.trf.xlu0
        %v224 = vpop.trf.xlu0
        %v225 = vpop.trf.xlu0
        %v226 = vpop.trf.xlu0
        %v227 = vpop.trf.xlu0
        %228 = vxpose.xlu0.b32.start [1/16] %v190, 128
        %229 = vxpose.xlu0.b32.cont [2/16] %v191, 128
        %230 = vxpose.xlu0.b32.cont [3/16] 0.0, 128
        %231 = vxpose.xlu0.b32.cont [4/16] 0.0, 128
        %232 = vxpose.xlu0.b32.cont [5/16] 0.0, 128
        %233 = vxpose.xlu0.b32.cont [6/16] 0.0, 128
        %234 = vxpose.xlu0.b32.cont [7/16] 0.0, 128
        %235 = vxpose.xlu0.b32.cont [8/16] 0.0, 128
        %236 = vxpose.xlu0.b32.cont [9/16] 0.0, 128
        %237 = vxpose.xlu0.b32.cont [10/16] 0.0, 128
        %238 = vxpose.xlu0.b32.cont [11/16] 0.0, 128
        %239 = vxpose.xlu0.b32.cont [12/16] 0.0, 128
        %240 = vxpose.xlu0.b32.cont [13/16] 0.0, 128
        %241 = vxpose.xlu0.b32.cont [14/16] 0.0, 128
        %242 = vxpose.xlu0.b32.cont [15/16] 0.0, 128
        %243 = vxpose.xlu0.b32.end [16/16] 0.0, 128
        %v244 = vpop.trf.xlu0
        %v245 = vpop.trf.xlu0
        %v246 = vpop.trf.xlu0
        %v247 = vpop.trf.xlu0
        %v248 = vpop.trf.xlu0
        %v249 = vpop.trf.xlu0
        %v250 = vpop.trf.xlu0
        %v251 = vpop.trf.xlu0
        %v252 = vpop.trf.xlu0
        %v253 = vpop.trf.xlu0
        %v254 = vpop.trf.xlu0
        %v255 = vpop.trf.xlu0
        %v256 = vpop.trf.xlu0
        %v257 = vpop.trf.xlu0
        %v258 = vpop.trf.xlu0
        %v259 = vpop.trf.xlu0
        %260 = vxpose.xlu0.b32.start [1/16] %v192, 128
        %261 = vxpose.xlu0.b32.cont [2/16] %v193, 128
        %262 = vxpose.xlu0.b32.cont [3/16] 0.0, 128
        %263 = vxpose.xlu0.b32.cont [4/16] 0.0, 128
        %264 = vxpose.xlu0.b32.cont [5/16] 0.0, 128
        %265 = vxpose.xlu0.b32.cont [6/16] 0.0, 128
        %266 = vxpose.xlu0.b32.cont [7/16] 0.0, 128
        %267 = vxpose.xlu0.b32.cont [8/16] 0.0, 128
        %268 = vxpose.xlu0.b32.cont [9/16] 0.0, 128
        %269 = vxpose.xlu0.b32.cont [10/16] 0.0, 128
        %270 = vxpose.xlu0.b32.cont [11/16] 0.0, 128
        %271 = vxpose.xlu0.b32.cont [12/16] 0.0, 128
        %272 = vxpose.xlu0.b32.cont [13/16] 0.0, 128
        %273 = vxpose.xlu0.b32.cont [14/16] 0.0, 128
        %274 = vxpose.xlu0.b32.cont [15/16] 0.0, 128
        %275 = vxpose.xlu0.b32.end [16/16] 0.0, 128
        %v276 = vpop.trf.xlu0
        %v277 = vpop.trf.xlu0
        %v278 = vpop.trf.xlu0
        %v279 = vpop.trf.xlu0
        %v280 = vpop.trf.xlu0
        %v281 = vpop.trf.xlu0
        %v282 = vpop.trf.xlu0
        %v283 = vpop.trf.xlu0
        %v284 = vpop.trf.xlu0
        %v285 = vpop.trf.xlu0
        %v286 = vpop.trf.xlu0
        %v287 = vpop.trf.xlu0
        %v288 = vpop.trf.xlu0
        %v289 = vpop.trf.xlu0
        %v290 = vpop.trf.xlu0
        %v291 = vpop.trf.xlu0
        %292 = vxpose.xlu0.b32.start [1/16] %v194, 128
        %293 = vxpose.xlu0.b32.cont [2/16] %v195, 128
        %294 = vxpose.xlu0.b32.cont [3/16] 0.0, 128
        %295 = vxpose.xlu0.b32.cont [4/16] 0.0, 128
        %296 = vxpose.xlu0.b32.cont [5/16] 0.0, 128
        %297 = vxpose.xlu0.b32.cont [6/16] 0.0, 128
        %298 = vxpose.xlu0.b32.cont [7/16] 0.0, 128
        %299 = vxpose.xlu0.b32.cont [8/16] 0.0, 128
        %300 = vxpose.xlu0.b32.cont [9/16] 0.0, 128
        %301 = vxpose.xlu0.b32.cont [10/16] 0.0, 128
        %302 = vxpose.xlu0.b32.cont [11/16] 0.0, 128
        %303 = vxpose.xlu0.b32.cont [12/16] 0.0, 128
        %304 = vxpose.xlu0.b32.cont [13/16] 0.0, 128
        %305 = vxpose.xlu0.b32.cont [14/16] 0.0, 128
        %306 = vxpose.xlu0.b32.cont [15/16] 0.0, 128
        %307 = vxpose.xlu0.b32.end [16/16] 0.0, 128
        %v308 = vpop.trf.xlu0
        %v309 = vpop.trf.xlu0
        %v310 = vpop.trf.xlu0
        %v311 = vpop.trf.xlu0
        %v312 = vpop.trf.xlu0
        %v313 = vpop.trf.xlu0
        %v314 = vpop.trf.xlu0
        %v315 = vpop.trf.xlu0
        %v316 = vpop.trf.xlu0
        %v317 = vpop.trf.xlu0
        %v318 = vpop.trf.xlu0
        %v319 = vpop.trf.xlu0
        %v320 = vpop.trf.xlu0
        %v321 = vpop.trf.xlu0
        %v322 = vpop.trf.xlu0
        %v323 = vpop.trf.xlu0
        %vm324 = vcmask 130048
        %325 = vst.msk [vmem:[%s185] sm:$0xff] %vm324, %v212
        %326 = vst.msk [vmem:[%s185 + $0x8] sm:$0xff] %vm324, %v213
        %327 = vst.msk [vmem:[%s185 + $0x10] sm:$0xff] %vm324, %v214
        %328 = vst.msk [vmem:[%s185 + $0x18] sm:$0xff] %vm324, %v215
        %329 = vst.msk [vmem:[%s185 + $0x20] sm:$0xff] %vm324, %v244
        %330 = vst.msk [vmem:[%s185 + $0x28] sm:$0xff] %vm324, %v245
        %331 = vst.msk [vmem:[%s185 + $0x30] sm:$0xff] %vm324, %v246
        %332 = vst.msk [vmem:[%s185 + $0x38] sm:$0xff] %vm324, %v247
        %333 = vst.msk [vmem:[%s185 + $0x40] sm:$0xff] %vm324, %v276
        %334 = vst.msk [vmem:[%s185 + $0x48] sm:$0xff] %vm324, %v277
        %335 = vst.msk [vmem:[%s185 + $0x50] sm:$0xff] %vm324, %v278
        %336 = vst.msk [vmem:[%s185 + $0x58] sm:$0xff] %vm324, %v279
        %337 = vst.msk [vmem:[%s185 + $0x60] sm:$0xff] %vm324, %v308
        %338 = vst.msk [vmem:[%s185 + $0x68] sm:$0xff] %vm324, %v309
        %339 = vst.msk [vmem:[%s185 + $0x70] sm:$0xff] %vm324, %v310
        %340 = vst.msk [vmem:[%s185 + $0x78] sm:$0xff] %vm324, %v311
        %s341 = smul.u32 4, %s20
        %s342 = smul.u32 4, %s22
        %p343 = scmp.lt.s32.totalorder %s341, 7
        %s344 = scalar_select %p343, %s341, 7
        %p345 = scmp.lt.s32.totalorder %s342, 3
        %s346 = scalar_select %p345, %s342, 3
        %p347 = scmp.lt.s32.totalorder %s21, 0
        %s348 = scalar_select %p347, %s21, 0
        %s349 = sadd.s32 %s348, %s346
        %s350 = smul.addr %s344, 4
        %s351 = sadd.s32 %s349, %s350
        %s352 = smul.addr %s351, 8
        %s353 = scalar_lea.vmem %s1, %s352
        // Predicated region
        $region29: #{tpu_custom_call.1} parent=23 // pred_check
          %p354 = pneg %p86
        $region30: #{tpu_custom_call.1} parent=23 // pred_check_branch
          %356 = sbr.rel (%p354) target = $region32
        $region31: #{tpu_custom_call.1} parent=23 // pred_region
          %s357 = smul.u32 4, %s20
          %s358 = smul.u32 4, %s22
        $region32: #{tpu_custom_call.1} parent=23 // pred_fallthru
          _
      $region24: #{tpu_custom_call.1} parent=5 // pred_fallthru
        _
      %p359 = scmp.le.s32.totalorder 2, %s10
      // Predicated region
      $region33: #{tpu_custom_call.1} parent=5 // pred_check
        %p360 = pneg %p359
      $region34: #{tpu_custom_call.1} parent=5 // pred_check_branch
        %362 = sbr.rel (%p360) target = $region36
      $region35: #{tpu_custom_call.1} parent=5 // pred_region
        %s363 = ssub.s32 %s10, 2
        // Predicated region
        $region37: #{tpu_custom_call.1} parent=35 // pred_check
          %p364 = pneg %p92
        $region38: #{tpu_custom_call.1} parent=35 // pred_check_branch
          %366 = sbr.rel (%p364) target = $region40
        $region39: #{tpu_custom_call.1} parent=35 // pred_region
          %s367 = smul.u32 4, %s23
          %s368 = smul.u32 4, %s25
          %p369 = scmp.lt.s32.totalorder %s367, 7
          %s370 = scalar_select %p369, %s367, 7
          %p371 = scmp.lt.s32.totalorder %s368, 3
          %s372 = scalar_select %p371, %s368, 3
          %p373 = scmp.lt.s32.totalorder %s24, 0
          %s374 = scalar_select %p373, %s24, 0
          %s375 = sadd.s32 %s374, %s372
          %s376 = smul.addr %s370, 4
          %s377 = sadd.s32 %s375, %s376
          %s378 = smul.addr %s377, 8
          %s379 = scalar_lea.vmem %s1, %s378
        $region40: #{tpu_custom_call.1} parent=35 // pred_fallthru
          _
      $region36: #{tpu_custom_call.1} parent=5 // pred_fallthru
        _
    $region6: #{tpu_custom_call.1} parent=1 // loop_footer
      %s14 = sadd.s32 1, %s10
    $region7: #{tpu_custom_call.1} parent=1 // loop_footer_branch
      %9 = sbr.rel target = $region3
    $region8: #{tpu_custom_call.1} parent=1 // loop_exit
      _
    %380 = vsyncpa [#allocation3], 1
    %s381 = scalar_lea.sflag [#allocation3], 1
    %382 = vsyncpa %s381, 1

</llo_original>
